<compile_context>
chip_gen: v5e
topology: v5e:2x2
jax: 0.10.0
libtpu: 0.0.40
codegen_flags: <defaults>
</compile_context>

<pallas_src>
import jax
import jax.numpy as jnp
from jax.experimental import pallas as pl
from jax.experimental.pallas import tpu as pltpu

P = 3    # number of priors / weight mods
C = 4    # x channels
CH = 8   # prior hidden channels
CC = 2   # coords channels (e.g. lat/lon)

TOK_ROW_TARGET = 256          # 256 rows of 128 tokens -> up to 32768 tokens / grid step
_N_SCAL = P * CC + P          # packed weight-mod scalars (wm then bm) kept in SMEM


def _pick_tok_tile(rows_per_split, target=TOK_ROW_TARGET):
    """Largest token tile (multiple of 128) that divides the per-split extent."""
    cap = min(rows_per_split, target)
    for r in range(cap, 0, -1):
        if rows_per_split % r == 0:
            return r * 128
    return 128


def multiprior_kernel(pm_ref, w1_ref, b1_ref, w2_ref, b2_ref,
                      x_ref, c_ref, out_ref, acc_ref):
    j = pl.program_id(2)

    @pl.when(j == 0)
    def _init():
        acc_ref[...] = jnp.zeros_like(acc_ref)

    # Tokens are on the lane axis; channels are a tiny contractible leading axis.
    xb = x_ref[0].astype(jnp.float32)      # (C,  T)
    cb = c_ref[0].astype(jnp.float32)      # (CC, T)

    # ---- prior 1x1-conv autoencoders: two small f32 matmuls on the MXU -------
    h = jnp.dot(w1_ref[...], xb, preferred_element_type=jnp.float32)   # (P*CH, T)
    h = jnp.maximum(h + b1_ref[...], 0.0)                              # bias + relu
    ob = jnp.dot(w2_ref[...], h, preferred_element_type=jnp.float32)   # (P*C, T)
    ob = ob + b2_ref[...]

    # ---- weight-mod logits + softmax over the prior axis (VPU/EUP) -----------
    logits = []
    for p in range(P):
        l = cb[0:1, :] * pm_ref[p * CC + 0]
        for k in range(1, CC):
            l = l + cb[k:k + 1, :] * pm_ref[p * CC + k]
        logits.append(l + pm_ref[P * CC + p])            # P x (1, T)

    m = logits[0]
    for p in range(1, P):
        m = jnp.maximum(m, logits[p])
    exps = [jnp.exp(l - m) for l in logits]
    den = exps[0]
    for p in range(1, P):
        den = den + exps[p]
    inv = pl.reciprocal(den, approx=False)   # exact rcp keeps the 1e-5 parity check
    weis = [e * inv for e in exps]           # P x (1, T) softmax weights

    # ---- softmax-weighted mixture + squared error (VPU) ----------------------
    phi = weis[0] * ob[0:C, :]
    for p in range(1, P):
        phi = phi + weis[p] * ob[p * C:(p + 1) * C, :]   # (1,T) bcast over (C,T)
    d = xb - phi
    acc_ref[...] += d * d

    @pl.when(j == pl.num_programs(2) - 1)
    def _finalize():
        # Single cross-lane reduction + tiny assignment per (batch, split) pair.
        out_ref[...] = jnp.sum(acc_ref[...]).reshape(1, 1, 1)


def multiprior_cost(x_nchw, coords_nchw, params):
    """Returns scalar MSE(x, forward_ae((x, coords)))."""
    w1, b1, w2, b2, wm, bm = params
    B, Cx, H, W = x_nchw.shape
    assert Cx == C and coords_nchw.shape == (B, CC, H, W)
    HW = H * W
    # TODO(synk): remainder masking for H*W not a multiple of 128.
    assert HW % 128 == 0, "H*W must be a multiple of 128 for this demo"

    n_rows = HW // 128
    # 2-way token split so both v7x TensorCores are covered even when B == 1.
    nsplit = 2 if n_rows % 2 == 0 else 1
    rows_per_split = n_rows // nsplit
    t_step = _pick_tok_tile(rows_per_split)
    n_j = (rows_per_split * 128) // t_step

    # Pure reshapes (no transpose, no dtype upcast): dtype passthrough -> bf16
    # inputs would halve HBM traffic; upcast happens inside the kernel.
    x_r = x_nchw.reshape(B, C, HW)
    c_r = coords_nchw.reshape(B, CC, HW)

    # MXU-friendly packed weights (built once, outside the kernel).
    f32 = jnp.float32
    w1all = jnp.transpose(w1, (0, 2, 1)).reshape(P * CH, C).astype(f32)   # (24, 4)
    b1col = b1.reshape(P * CH, 1).astype(f32)                             # (24, 1)
    w2bd = jnp.zeros((P * C, P * CH), f32)                                # (12, 24) block-diag
    for p in range(P):
        w2bd = w2bd.at[p * C:(p + 1) * C, p * CH:(p + 1) * CH].set(w2[p].T.astype(f32))
    b2col = b2.reshape(P * C, 1).astype(f32)                              # (12, 1)
    pm = jnp.concatenate([wm[:, :, 0].reshape(-1), bm.reshape(-1)]).astype(f32)
    assert pm.shape[0] == _N_SCAL

    const = lambda b, h, j: (0, 0)
    tok = lambda b, h, j: (b, 0, h * n_j + j)

    partial = pl.pallas_call(
        multiprior_kernel,
        out_shape=jax.ShapeDtypeStruct((B * nsplit, 1, 1), jnp.float32),
        grid_spec=pltpu.PrefetchScalarGridSpec(
            num_scalar_prefetch=0,
            grid=(B, nsplit, n_j),                     # reduction axis last
            in_specs=[
                pl.BlockSpec(memory_space=pltpu.MemorySpace.SMEM),   # wm/bm scalars
                pl.BlockSpec((P * CH, C), const),                    # W1all
                pl.BlockSpec((P * CH, 1), const),                    # b1
                pl.BlockSpec((P * C, P * CH), const),                # W2 block-diagonal
                pl.BlockSpec((P * C, 1), const),                     # b2
                pl.BlockSpec((1, C, t_step), tok),                   # x tokens
                pl.BlockSpec((1, CC, t_step), tok),                  # coords tokens
            ],
            out_specs=pl.BlockSpec((1, 1, 1),
                                   lambda b, h, j: (b * nsplit + h, 0, 0)),
            scratch_shapes=[pltpu.VMEM((C, t_step), jnp.float32)],
        ),
        compiler_params=pltpu.CompilerParams(
            dimension_semantics=("parallel", "parallel", "arbitrary"),
            vmem_limit_bytes=32 * 1024 * 1024),
    )(pm, w1all, b1col, w2bd, b2col, x_r, c_r)

    return jnp.sum(partial) / (B * C * H * W)


def reference(x_nchw, coords_nchw, params):
    """Pure-JAX reference of the PyTorch forward semantics."""
    w1, b1, w2, b2, wm, bm = params
    xt = jnp.transpose(x_nchw, (0, 2, 3, 1))       # B,H,W,C
    ct = jnp.transpose(coords_nchw, (0, 2, 3, 1))  # B,H,W,CC
    phi_outs = jnp.stack(
        [jnp.maximum(xt @ w1[p] + b1[p], 0.0) @ w2[p] + b2[p] for p in range(P)],
        axis=0)                                    # (P,B,H,W,C)
    logits = jnp.stack([ct @ wm[p] + bm[p] for p in range(P)], axis=0)  # (P,B,H,W,1)
    weis = jax.nn.softmax(logits, axis=0)
    phi = (phi_outs * weis).sum(0)
    return jnp.mean((xt - phi) ** 2)


def make_params(key):
    ks = jax.random.split(key, 6)
    w1 = 0.3 * jax.random.normal(ks[0], (P, C, CH), jnp.float32)
    b1 = 0.1 * jax.random.normal(ks[1], (P, CH), jnp.float32)
    w2 = 0.3 * jax.random.normal(ks[2], (P, CH, C), jnp.float32)
    b2 = 0.1 * jax.random.normal(ks[3], (P, C), jnp.float32)
    wm = 0.5 * jax.random.normal(ks[4], (P, CC, 1), jnp.float32)
    bm = 0.1 * jax.random.normal(ks[5], (P, 1), jnp.float32)
    return (w1, b1, w2, b2, wm, bm)


if __name__ == "__main__":
    key = jax.random.PRNGKey(0)
    kx, kc, kp = jax.random.split(key, 3)

    B, H, W = 2, 32, 32   # HW=1024 tokens -> grid (2, 2, 1), 512 tokens/step
    x = jax.random.normal(kx, (B, C, H, W), jnp.float32)        # NCHW state
    coords = jax.random.normal(kc, (B, CC, H, W), jnp.float32)  # NCHW coords
    params = make_params(kp)

    loss = multiprior_cost(x, coords, params)
    loss = jax.block_until_ready(loss)

    ref = reference(x, coords, params)
    assert jnp.allclose(loss, ref, rtol=1e-5, atol=1e-5), (loss, ref)

    print("KERNEL_OK")
</pallas_src>

<mosaic_0001>
module attributes {stable_mosaic.version = 11 : i64} {
  func.func @multiprior_kernel(%arg0: i32, %arg1: i32, %arg2: i32, %arg3: memref<9xf32, #tpu.memory_space<smem>>, %arg4: memref<24x4xf32, #tpu.memory_space<vmem>>, %arg5: memref<24x1xf32, #tpu.memory_space<vmem>>, %arg6: memref<12x24xf32, #tpu.memory_space<vmem>>, %arg7: memref<12x1xf32, #tpu.memory_space<vmem>>, %arg8: memref<1x4x512xf32, #tpu.memory_space<vmem>>, %arg9: memref<1x2x512xf32, #tpu.memory_space<vmem>>, %arg10: memref<1x1x1xf32, #tpu.memory_space<vmem>>, %arg11: memref<4x512xf32, #tpu.memory_space<vmem>>) attributes {dimension_semantics = [#tpu.dimension_semantics<parallel>, #tpu.dimension_semantics<parallel>, #tpu.dimension_semantics<arbitrary>], iteration_bounds = array<i64: 2, 2, 1>, scalar_prefetch = 0 : i64, scratch_operands = 1 : i64, tpu.core_type = #tpu.core_type<tc>, window_params = [{transform_indices = @transform_0, window_bounds = array<i64: 9>}, {pipeline_mode = #tpu.pipeline_mode<synchronous>, transform_indices = @transform_1, window_bounds = array<i64: 24, 4>}, {pipeline_mode = #tpu.pipeline_mode<synchronous>, transform_indices = @transform_2, window_bounds = array<i64: 24, 1>}, {pipeline_mode = #tpu.pipeline_mode<synchronous>, transform_indices = @transform_3, window_bounds = array<i64: 12, 24>}, {pipeline_mode = #tpu.pipeline_mode<synchronous>, transform_indices = @transform_4, window_bounds = array<i64: 12, 1>}, {transform_indices = @transform_5, window_bounds = array<i64: 1, 4, 512>}, {transform_indices = @transform_6, window_bounds = array<i64: 1, 2, 512>}, {transform_indices = @transform_7, window_bounds = array<i64: 1, 1, 1>}]} {
    %c0_i32 = arith.constant 0 : i32
    %0 = arith.cmpi eq, %arg2, %c0_i32 : i32
    %1 = arith.extui %0 : i1 to i32
    %c0_i32_0 = arith.constant 0 : i32
    %2 = arith.cmpi ne, %1, %c0_i32_0 : i32
    scf.if %2 {
      %cst_23 = arith.constant 0.000000e+00 : f32
      %88 = vector.broadcast %cst_23 : f32 to vector<4x512xf32>
      %c0_24 = arith.constant 0 : index
      %c0_25 = arith.constant 0 : index
      %89 = vector.load %arg11[%c0_24, %c0_25] : memref<4x512xf32, #tpu.memory_space<vmem>>, vector<4x512xf32>
      tpu.vector_store %arg11[%c0_24, %c0_25], %88 {strides = array<i32>} : memref<4x512xf32, #tpu.memory_space<vmem>>, vector<4x512xf32>,
    } else {
    }
    %c0 = arith.constant 0 : index
    %c0_1 = arith.constant 0 : index
    %c0_2 = arith.constant 0 : index
    %3 = vector.load %arg8[%c0, %c0_1, %c0_2] : memref<1x4x512xf32, #tpu.memory_space<vmem>>, vector<1x4x512xf32>
    %4 = vector.shape_cast %3 : vector<1x4x512xf32> to vector<4x512xf32>
    %c0_3 = arith.constant 0 : index
    %c0_4 = arith.constant 0 : index
    %c0_5 = arith.constant 0 : index
    %5 = vector.load %arg9[%c0_3, %c0_4, %c0_5] : memref<1x2x512xf32, #tpu.memory_space<vmem>>, vector<1x2x512xf32>
    %6 = vector.shape_cast %5 : vector<1x2x512xf32> to vector<2x512xf32>
    %c0_6 = arith.constant 0 : index
    %c0_7 = arith.constant 0 : index
    %7 = vector.load %arg4[%c0_6, %c0_7] : memref<24x4xf32, #tpu.memory_space<vmem>>, vector<24x4xf32>
    %cst = arith.constant dense<0.000000e+00> : vector<24x512xf32>
    %8 = tpu.matmul %7, %4, %cst {dimension_numbers = #tpu.dot_dimension_numbers<[1], [0], [0], [1], [0, 0, 1, 1], [], []>} : vector<24x4xf32>, vector<4x512xf32>, vector<24x512xf32> -> vector<24x512xf32>
    %c0_8 = arith.constant 0 : index
    %c0_9 = arith.constant 0 : index
    %9 = vector.load %arg5[%c0_8, %c0_9] : memref<24x1xf32, #tpu.memory_space<vmem>>, vector<24x1xf32>
    %10 = vector.broadcast %9 : vector<24x1xf32> to vector<24x512xf32>
    %11 = arith.addf %8, %10 : vector<24x512xf32>
    %cst_10 = arith.constant 0.000000e+00 : f32
    %12 = vector.broadcast %cst_10 : f32 to vector<24x512xf32>
    %13 = arith.maximumf %11, %12 : vector<24x512xf32>
    %c0_11 = arith.constant 0 : index
    %c0_12 = arith.constant 0 : index
    %14 = vector.load %arg6[%c0_11, %c0_12] : memref<12x24xf32, #tpu.memory_space<vmem>>, vector<12x24xf32>
    %cst_13 = arith.constant dense<0.000000e+00> : vector<12x512xf32>
    %15 = tpu.matmul %14, %13, %cst_13 {dimension_numbers = #tpu.dot_dimension_numbers<[1], [0], [0], [1], [0, 0, 1, 1], [], []>} : vector<12x24xf32>, vector<24x512xf32>, vector<12x512xf32> -> vector<12x512xf32>
    %c0_14 = arith.constant 0 : index
    %c0_15 = arith.constant 0 : index
    %16 = vector.load %arg7[%c0_14, %c0_15] : memref<12x1xf32, #tpu.memory_space<vmem>>, vector<12x1xf32>
    %17 = vector.broadcast %16 : vector<12x1xf32> to vector<12x512xf32>
    %18 = arith.addf %15, %17 : vector<12x512xf32>
    %19 = vector.extract_strided_slice %6 {offsets = [0, 0], sizes = [1, 512], strides = [1, 1]} : vector<2x512xf32> to vector<1x512xf32>
    %c0_16 = arith.constant 0 : index
    %20 = memref.load %arg3[%c0_16] : memref<9xf32, #tpu.memory_space<smem>>
    %21 = vector.broadcast %20 : f32 to vector<1x512xf32>
    %22 = arith.mulf %19, %21 : vector<1x512xf32>
    %23 = vector.extract_strided_slice %6 {offsets = [1, 0], sizes = [1, 512], strides = [1, 1]} : vector<2x512xf32> to vector<1x512xf32>
    %c1 = arith.constant 1 : index
    %24 = memref.load %arg3[%c1] : memref<9xf32, #tpu.memory_space<smem>>
    %25 = vector.broadcast %24 : f32 to vector<1x512xf32>
    %26 = arith.mulf %23, %25 : vector<1x512xf32>
    %27 = arith.addf %22, %26 : vector<1x512xf32>
    %c6 = arith.constant 6 : index
    %28 = memref.load %arg3[%c6] : memref<9xf32, #tpu.memory_space<smem>>
    %29 = vector.broadcast %28 : f32 to vector<1x512xf32>
    %30 = arith.addf %27, %29 : vector<1x512xf32>
    %31 = vector.extract_strided_slice %6 {offsets = [0, 0], sizes = [1, 512], strides = [1, 1]} : vector<2x512xf32> to vector<1x512xf32>
    %c2 = arith.constant 2 : index
    %32 = memref.load %arg3[%c2] : memref<9xf32, #tpu.memory_space<smem>>
    %33 = vector.broadcast %32 : f32 to vector<1x512xf32>
    %34 = arith.mulf %31, %33 : vector<1x512xf32>
    %35 = vector.extract_strided_slice %6 {offsets = [1, 0], sizes = [1, 512], strides = [1, 1]} : vector<2x512xf32> to vector<1x512xf32>
    %c3 = arith.constant 3 : index
    %36 = memref.load %arg3[%c3] : memref<9xf32, #tpu.memory_space<smem>>
    %37 = vector.broadcast %36 : f32 to vector<1x512xf32>
    %38 = arith.mulf %35, %37 : vector<1x512xf32>
    %39 = arith.addf %34, %38 : vector<1x512xf32>
    %c7 = arith.constant 7 : index
    %40 = memref.load %arg3[%c7] : memref<9xf32, #tpu.memory_space<smem>>
    %41 = vector.broadcast %40 : f32 to vector<1x512xf32>
    %42 = arith.addf %39, %41 : vector<1x512xf32>
    %43 = vector.extract_strided_slice %6 {offsets = [0, 0], sizes = [1, 512], strides = [1, 1]} : vector<2x512xf32> to vector<1x512xf32>
    %c4 = arith.constant 4 : index
    %44 = memref.load %arg3[%c4] : memref<9xf32, #tpu.memory_space<smem>>
    %45 = vector.broadcast %44 : f32 to vector<1x512xf32>
    %46 = arith.mulf %43, %45 : vector<1x512xf32>
    %47 = vector.extract_strided_slice %6 {offsets = [1, 0], sizes = [1, 512], strides = [1, 1]} : vector<2x512xf32> to vector<1x512xf32>
    %c5 = arith.constant 5 : index
    %48 = memref.load %arg3[%c5] : memref<9xf32, #tpu.memory_space<smem>>
    %49 = vector.broadcast %48 : f32 to vector<1x512xf32>
    %50 = arith.mulf %47, %49 : vector<1x512xf32>
    %51 = arith.addf %46, %50 : vector<1x512xf32>
    %c8 = arith.constant 8 : index
    %52 = memref.load %arg3[%c8] : memref<9xf32, #tpu.memory_space<smem>>
    %53 = vector.broadcast %52 : f32 to vector<1x512xf32>
    %54 = arith.addf %51, %53 : vector<1x512xf32>
    %55 = arith.maximumf %30, %42 : vector<1x512xf32>
    %56 = arith.maximumf %55, %54 : vector<1x512xf32>
    %57 = arith.subf %30, %56 : vector<1x512xf32>
    %58 = math.exp %57 : vector<1x512xf32>
    %59 = arith.subf %42, %56 : vector<1x512xf32>
    %60 = math.exp %59 : vector<1x512xf32>
    %61 = arith.subf %54, %56 : vector<1x512xf32>
    %62 = math.exp %61 : vector<1x512xf32>
    %63 = arith.addf %58, %60 : vector<1x512xf32>
    %64 = arith.addf %63, %62 : vector<1x512xf32>
    %65 = tpu.reciprocal %64 : vector<1x512xf32> -> vector<1x512xf32>
    %66 = arith.mulf %58, %65 : vector<1x512xf32>
    %67 = arith.mulf %60, %65 : vector<1x512xf32>
    %68 = arith.mulf %62, %65 : vector<1x512xf32>
    %69 = vector.extract_strided_slice %18 {offsets = [0, 0], sizes = [4, 512], strides = [1, 1]} : vector<12x512xf32> to vector<4x512xf32>
    %70 = vector.broadcast %66 : vector<1x512xf32> to vector<4x512xf32>
    %71 = arith.mulf %70, %69 : vector<4x512xf32>
    %72 = vector.extract_strided_slice %18 {offsets = [4, 0], sizes = [4, 512], strides = [1, 1]} : vector<12x512xf32> to vector<4x512xf32>
    %73 = vector.broadcast %67 : vector<1x512xf32> to vector<4x512xf32>
    %74 = arith.mulf %73, %72 : vector<4x512xf32>
    %75 = arith.addf %71, %74 : vector<4x512xf32>
    %76 = vector.extract_strided_slice %18 {offsets = [8, 0], sizes = [4, 512], strides = [1, 1]} : vector<12x512xf32> to vector<4x512xf32>
    %77 = vector.broadcast %68 : vector<1x512xf32> to vector<4x512xf32>
    %78 = arith.mulf %77, %76 : vector<4x512xf32>
    %79 = arith.addf %75, %78 : vector<4x512xf32>
    %80 = arith.subf %4, %79 : vector<4x512xf32>
    %c0_17 = arith.constant 0 : index
    %c0_18 = arith.constant 0 : index
    %81 = vector.load %arg11[%c0_17, %c0_18] : memref<4x512xf32, #tpu.memory_space<vmem>>, vector<4x512xf32>
    %82 = arith.mulf %80, %80 : vector<4x512xf32>
    %83 = arith.addf %81, %82 : vector<4x512xf32>
    %c0_19 = arith.constant 0 : index
    %c0_20 = arith.constant 0 : index
    %84 = vector.load %arg11[%c0_19, %c0_20] : memref<4x512xf32, #tpu.memory_space<vmem>>, vector<4x512xf32>
    tpu.vector_store %arg11[%c0_19, %c0_20], %83 {strides = array<i32>} : memref<4x512xf32, #tpu.memory_space<vmem>>, vector<4x512xf32>,
    %c0_i32_21 = arith.constant 0 : i32
    %85 = arith.cmpi eq, %arg2, %c0_i32_21 : i32
    %86 = arith.extui %85 : i1 to i32
    %c0_i32_22 = arith.constant 0 : i32
    %87 = arith.cmpi ne, %86, %c0_i32_22 : i32
    scf.if %87 {
      %c0_23 = arith.constant 0 : index
      %c0_24 = arith.constant 0 : index
      %88 = vector.load %arg11[%c0_23, %c0_24] : memref<4x512xf32, #tpu.memory_space<vmem>>, vector<4x512xf32>
      %89 = vector.shape_cast %88 : vector<4x512xf32> to vector<1x4x512xf32>
      %cst_25 = arith.constant dense<0.000000e+00> : vector<1xf32>
      %90 = vector.multi_reduction <add>, %89, %cst_25 [1, 2] : vector<1x4x512xf32> to vector<1xf32>
      %91 = vector.shape_cast %90 : vector<1xf32> to vector<1x1x1xf32>
      %92 = vector.extract %91[0, 0, 0] : f32 from vector<1x1x1xf32>
      %93 = vector.broadcast %92 : f32 to vector<1x1x1xf32>
      %c0_26 = arith.constant 0 : index
      %c0_27 = arith.constant 0 : index
      %c0_28 = arith.constant 0 : index
      %94 = vector.load %arg10[%c0_26, %c0_27, %c0_28] : memref<1x1x1xf32, #tpu.memory_space<vmem>>, vector<1x1x1xf32>
      tpu.vector_store %arg10[%c0_26, %c0_27, %c0_28], %93 {strides = array<i32>} : memref<1x1x1xf32, #tpu.memory_space<vmem>>, vector<1x1x1xf32>,
    } else {
    }
    return
  }
  func.func @transform_0(%arg0: i32, %arg1: i32, %arg2: i32) -> i32 {
    %c0_i32 = arith.constant 0 : i32
    %c0_i32_0 = arith.constant 0 : i32
    return %c0_i32 : i32
  }
  func.func @transform_1(%arg0: i32, %arg1: i32, %arg2: i32) -> (i32, i32) {
    %c0_i32 = arith.constant 0 : i32
    %c0_i32_0 = arith.constant 0 : i32
    %c0_i32_1 = arith.constant 0 : i32
    return %c0_i32, %c0_i32_0 : i32, i32
  }
  func.func @transform_2(%arg0: i32, %arg1: i32, %arg2: i32) -> (i32, i32) {
    %c0_i32 = arith.constant 0 : i32
    %c0_i32_0 = arith.constant 0 : i32
    %c0_i32_1 = arith.constant 0 : i32
    return %c0_i32, %c0_i32_0 : i32, i32
  }
  func.func @transform_3(%arg0: i32, %arg1: i32, %arg2: i32) -> (i32, i32) {
    %c0_i32 = arith.constant 0 : i32
    %c0_i32_0 = arith.constant 0 : i32
    %c0_i32_1 = arith.constant 0 : i32
    return %c0_i32, %c0_i32_0 : i32, i32
  }
  func.func @transform_4(%arg0: i32, %arg1: i32, %arg2: i32) -> (i32, i32) {
    %c0_i32 = arith.constant 0 : i32
    %c0_i32_0 = arith.constant 0 : i32
    %c0_i32_1 = arith.constant 0 : i32
    return %c0_i32, %c0_i32_0 : i32, i32
  }
  func.func @transform_5(%arg0: i32, %arg1: i32, %arg2: i32) -> (i32, i32, i32) {
    %c1_i32 = arith.constant 1 : i32
    %0 = arith.muli %arg1, %c1_i32 : i32
    %1 = arith.addi %0, %arg2 : i32
    %c0_i32 = arith.constant 0 : i32
    %c0_i32_0 = arith.constant 0 : i32
    return %arg0, %c0_i32, %1 : i32, i32, i32
  }
  func.func @transform_6(%arg0: i32, %arg1: i32, %arg2: i32) -> (i32, i32, i32) {
    %c1_i32 = arith.constant 1 : i32
    %0 = arith.muli %arg1, %c1_i32 : i32
    %1 = arith.addi %0, %arg2 : i32
    %c0_i32 = arith.constant 0 : i32
    %c0_i32_0 = arith.constant 0 : i32
    return %arg0, %c0_i32, %1 : i32, i32, i32
  }
  func.func @transform_7(%arg0: i32, %arg1: i32, %arg2: i32) -> (i32, i32, i32) {
    %c2_i32 = arith.constant 2 : i32
    %0 = arith.muli %arg0, %c2_i32 : i32
    %1 = arith.addi %0, %arg1 : i32
    %c0_i32 = arith.constant 0 : i32
    %c0_i32_0 = arith.constant 0 : i32
    %c0_i32_1 = arith.constant 0 : i32
    return %1, %c0_i32, %c0_i32_0 : i32, i32, i32
  }
}

</mosaic_0001>

<llo_original>
// kernel: tpu_custom_call.1
$region0: #{tpu_custom_call.1}
  #allocation0 [shape = 'u32[]', space=smem, size = 0x4, offset = 0x4, fixed_abs, tag = 'smem constant byte address 0x4 - core index']
  #allocation1 [shape = 'u32[72,128]{1,0:T(1,128)}', space=vmem, size = 0x9000, scoped, tag = 'internal scratch']
  #allocation2 [shape = 'f32[4,512]{1,0:T(4,128)}', space=vmem, size = 0x2000, scoped, tag = 'scratch operand']
  %s0 = inlined_call_operand.vmem [shape: f32[9], index: 0, kind: input, shape index: {}]
  %s1 = inlined_call_operand.vmem [shape: f32[24,4], index: 1, kind: input, shape index: {}]
  %s2 = inlined_call_operand.vmem [shape: f32[24,1], index: 2, kind: input, shape index: {}]
  %s3 = inlined_call_operand.vmem [shape: f32[12,24], index: 3, kind: input, shape index: {}]
  %s4 = inlined_call_operand.vmem [shape: f32[12,1], index: 4, kind: input, shape index: {}]
  %s5 = inlined_call_operand.hbm [shape: f32[2,4,1024], index: 5, kind: input, shape index: {}]
  %s6 = inlined_call_operand.vmem [shape: f32[2,2,1024], index: 6, kind: input, shape index: {}]
  %s7 = inlined_call_operand.vmem [shape: f32[4,1,1], index: 7, kind: output, shape index: {}]
  %s8 = sld [smem:[#allocation0]]
  $region77: #{tpu_custom_call.1} parent=0
    _
  %s10 = ssub.s32 1, %s8
  %s11 = scalar_select 0, %s10, %s8
  $region1: #{tpu_custom_call.1} parent=0
    #allocation3 [shape = 'u8[512]{0}', space=smem, size = 0x200, scoped, tag = 'input window, operand 0, single buffered']
    #allocation4 [shape = 's32[2]{0}', space=sflag, size = 0x8, scoped, tag = 'scoped memory for tpu_custom_call.1']
    #allocation5 [shape = 's32[2]{0}', space=sflag, size = 0x8, scoped, tag = 'scoped memory for tpu_custom_call.1']
    #allocation6 [shape = 'u8[16384]{0}', space=vmem, size = 0x4000, scoped, tag = 'input window, operand 5']
    %12 = vsyncpa [#allocation5], 0
    %13 = vsyncpa [#allocation4], 0
    %s14 = scalar_lea.sflag [#allocation4], 1
    %15 = vsyncpa %s14, 0
    loop: start=0, step=1, limit=6
    $region2: #{tpu_custom_call.1} parent=1 // loop_pre_header
      _
    $region3: #{tpu_custom_call.1} parent=1 // loop_header
      %s17 = sphi 0, %s21
      %p18 = scmp.ge.s32.totalorder %s17, 6
      %s24 = sphi 0, %s43
      %s25 = sphi 0, %s39
      %s26 = sphi 0, %s35
      %s27 = sphi 0, %s24
      %s28 = sphi 0, %s25
      %s29 = sphi 0, %s26
      %s30 = sphi 0, %s27
      %s31 = sphi 0, %s28
      %s32 = sphi 0, %s29
      %s44 = sphi 0, %s44
      %s46 = sphi 0, %s44
      %s47 = sphi 0, %s46
      %s61 = sphi 0, %s47
      %s65 = sphi 0, %s65
      %s67 = sphi 0, %s65
      %s68 = sphi 0, %s67
      %s82 = sphi 0, %s68
      %s86 = sphi 0, %s86
      %s88 = sphi 0, %s86
      %s89 = sphi 0, %s88
      %s103 = sphi 0, %s89
      %s107 = sphi 0, %s107
      %s109 = sphi 0, %s107
      %s110 = sphi 0, %s109
      %s124 = sphi 0, %s110
      %s128 = sphi 0, %s128
      %s130 = sphi 0, %s128
      %s131 = sphi 0, %s130
      %s145 = sphi 0, %s131
      %s155 = sphi 0, %s157
      %s158 = sphi 0, %s155
      %s159 = sphi 0, %s158
      %s175 = sphi 0, %s159
      %s185 = sphi 0, %s187
      %s188 = sphi 0, %s185
      %s189 = sphi 0, %s188
      %s205 = sphi 0, %s189
      %s215 = sphi 0, %s217
      %s218 = sphi 0, %s215
      %s219 = sphi 0, %s218
      %s235 = sphi 0, %s219
    $region4: #{tpu_custom_call.1} parent=1 // loop_header_branch
      %20 = sbr.rel (%p18) target = $region8
    $region5: #{tpu_custom_call.1} parent=1 // loop_body
      %s22 = ssub.s32 %s17, 1
      %s23 = ssub.s32 %s17, 2
      %s33 = sadd.s32 1, %s26
      %p34 = scmp.ge.s32.totalorder %s33, 1
      %s35 = scalar_select %p34, 0, %s33
      %s36 = sadd.s32 1, %s25
      %s37 = scalar_select %p34, %s36, %s25
      %p38 = scmp.ge.s32.totalorder %s37, 2
      %s39 = scalar_select %p38, 0, %s37
      %s40 = sadd.s32 1, %s24
      %s41 = scalar_select %p38, %s40, %s24
      %p42 = scmp.ge.s32.totalorder %s41, 2
      %s43 = scalar_select %p42, 0, %s41
      %s45 = sadd.s32 %s44, 1
      %p48 = scmp.eq.s32.totalorder %s17, 3
      %p49 = scmp.ne.s32.totalorder %s44, %s46
      %p50 = scmp.eq.s32.totalorder %s17, 0
      %p51 = por %p49, %p50
      %p52 = scmp.ne.s32.totalorder %s44, %s46
      %p53 = scmp.eq.s32.totalorder %s22, 3
      %p54 = por %p52, %p53
      %p55 = scmp.ne.s32.totalorder %s46, %s47
      %p56 = scmp.eq.s32.totalorder %s22, 0
      %p57 = por %p55, %p56
      %p58 = scmp.ne.s32.totalorder %s46, %s47
      %p59 = scmp.eq.s32.totalorder %s23, 3
      %p60 = por %p58, %p59
      %p62 = scmp.ne.s32.totalorder %s47, %s61
      %p63 = scmp.eq.s32.totalorder %s23, 0
      %p64 = por %p62, %p63
      %s66 = sadd.s32 %s65, 1
      %p69 = scmp.eq.s32.totalorder %s17, 3
      %p70 = scmp.ne.s32.totalorder %s65, %s67
      %p71 = scmp.eq.s32.totalorder %s17, 0
      %p72 = por %p70, %p71
      %p73 = scmp.ne.s32.totalorder %s65, %s67
      %p74 = scmp.eq.s32.totalorder %s22, 3
      %p75 = por %p73, %p74
      %p76 = scmp.ne.s32.totalorder %s67, %s68
      %p77 = scmp.eq.s32.totalorder %s22, 0
      %p78 = por %p76, %p77
      %p79 = scmp.ne.s32.totalorder %s67, %s68
      %p80 = scmp.eq.s32.totalorder %s23, 3
      %p81 = por %p79, %p80
      %p83 = scmp.ne.s32.totalorder %s68, %s82
      %p84 = scmp.eq.s32.totalorder %s23, 0
      %p85 = por %p83, %p84
      %s87 = sadd.s32 %s86, 1
      %p90 = scmp.eq.s32.totalorder %s17, 3
      %p91 = scmp.ne.s32.totalorder %s86, %s88
      %p92 = scmp.eq.s32.totalorder %s17, 0
      %p93 = por %p91, %p92
      %p94 = scmp.ne.s32.totalorder %s86, %s88
      %p95 = scmp.eq.s32.totalorder %s22, 3
      %p96 = por %p94, %p95
      %p97 = scmp.ne.s32.totalorder %s88, %s89
      %p98 = scmp.eq.s32.totalorder %s22, 0
      %p99 = por %p97, %p98
      %p100 = scmp.ne.s32.totalorder %s88, %s89
      %p101 = scmp.eq.s32.totalorder %s23, 3
      %p102 = por %p100, %p101
      %p104 = scmp.ne.s32.totalorder %s89, %s103
      %p105 = scmp.eq.s32.totalorder %s23, 0
      %p106 = por %p104, %p105
      %s108 = sadd.s32 %s107, 1
      %p111 = scmp.eq.s32.totalorder %s17, 3
      %p112 = scmp.ne.s32.totalorder %s107, %s109
      %p113 = scmp.eq.s32.totalorder %s17, 0
      %p114 = por %p112, %p113
      %p115 = scmp.ne.s32.totalorder %s107, %s109
      %p116 = scmp.eq.s32.totalorder %s22, 3
      %p117 = por %p115, %p116
      %p118 = scmp.ne.s32.totalorder %s109, %s110
      %p119 = scmp.eq.s32.totalorder %s22, 0
      %p120 = por %p118, %p119
      %p121 = scmp.ne.s32.totalorder %s109, %s110
      %p122 = scmp.eq.s32.totalorder %s23, 3
      %p123 = por %p121, %p122
      %p125 = scmp.ne.s32.totalorder %s110, %s124
      %p126 = scmp.eq.s32.totalorder %s23, 0
      %p127 = por %p125, %p126
      %s129 = sadd.s32 %s128, 1
      %p132 = scmp.eq.s32.totalorder %s17, 3
      %p133 = scmp.ne.s32.totalorder %s128, %s130
      %p134 = scmp.eq.s32.totalorder %s17, 0
      %p135 = por %p133, %p134
      %p136 = scmp.ne.s32.totalorder %s128, %s130
      %p137 = scmp.eq.s32.totalorder %s22, 3
      %p138 = por %p136, %p137
      %p139 = scmp.ne.s32.totalorder %s130, %s131
      %p140 = scmp.eq.s32.totalorder %s22, 0
      %p141 = por %p139, %p140
      %p142 = scmp.ne.s32.totalorder %s130, %s131
      %p143 = scmp.eq.s32.totalorder %s23, 3
      %p144 = por %p142, %p143
      %p146 = scmp.ne.s32.totalorder %s131, %s145
      %p147 = scmp.eq.s32.totalorder %s23, 0
      %p148 = por %p146, %p147
      %s149 = sadd.s32 %s25, %s26
      %s150 = sadd.s32 %s39, %s35
      %s151 = ssub.s32 %s24, %s43
      %s152 = ssub.s32 %s149, %s150
      %s153 = sor.u32 %s151, %s152
      %p154 = scmp.eq.s32.totalorder %s153, 0
      %s156 = sadd.s32 %s155, 1
      %s157 = scalar_select %p154, %s155, %s156
      %p160 = pneg %p154
      %p161 = scmp.eq.s32.totalorder %s17, 3
      %p162 = por %p160, %p161
      %p163 = scmp.ne.s32.totalorder %s155, %s158
      %p164 = scmp.eq.s32.totalorder %s17, 0
      %p165 = por %p163, %p164
      %p166 = scmp.ne.s32.totalorder %s155, %s158
      %p167 = scmp.eq.s32.totalorder %s22, 3
      %p168 = por %p166, %p167
      %p169 = scmp.ne.s32.totalorder %s158, %s159
      %p170 = scmp.eq.s32.totalorder %s22, 0
      %p171 = por %p169, %p170
      %p172 = scmp.ne.s32.totalorder %s158, %s159
      %p173 = scmp.eq.s32.totalorder %s23, 3
      %p174 = por %p172, %p173
      %p176 = scmp.ne.s32.totalorder %s159, %s175
      %p177 = scmp.eq.s32.totalorder %s23, 0
      %p178 = por %p176, %p177
      %s179 = sadd.s32 %s25, %s26
      %s180 = sadd.s32 %s39, %s35
      %s181 = ssub.s32 %s24, %s43
      %s182 = ssub.s32 %s179, %s180
      %s183 = sor.u32 %s181, %s182
      %p184 = scmp.eq.s32.totalorder %s183, 0
      %s186 = sadd.s32 %s185, 1
      %s187 = scalar_select %p184, %s185, %s186
      %p190 = pneg %p184
      %p191 = scmp.eq.s32.totalorder %s17, 3
      %p192 = por %p190, %p191
      %p193 = scmp.ne.s32.totalorder %s185, %s188
      %p194 = scmp.eq.s32.totalorder %s17, 0
      %p195 = por %p193, %p194
      %p196 = scmp.ne.s32.totalorder %s185, %s188
      %p197 = scmp.eq.s32.totalorder %s22, 3
      %p198 = por %p196, %p197
      %p199 = scmp.ne.s32.totalorder %s188, %s189
      %p200 = scmp.eq.s32.totalorder %s22, 0
      %p201 = por %p199, %p200
      %p202 = scmp.ne.s32.totalorder %s188, %s189
      %p203 = scmp.eq.s32.totalorder %s23, 3
      %p204 = por %p202, %p203
      %p206 = scmp.ne.s32.totalorder %s189, %s205
      %p207 = scmp.eq.s32.totalorder %s23, 0
      %p208 = por %p206, %p207
      %s209 = smul.u32 %s24, 2
      %s210 = sadd.s32 %s209, %s25
      %s211 = smul.u32 %s43, 2
      %s212 = sadd.s32 %s211, %s39
      %s213 = ssub.s32 %s210, %s212
      %p214 = scmp.eq.s32.totalorder %s213, 0
      %s216 = sadd.s32 %s215, 1
      %s217 = scalar_select %p214, %s215, %s216
      %p220 = pneg %p214
      %p221 = scmp.eq.s32.totalorder %s17, 3
      %p222 = por %p220, %p221
      %p223 = scmp.ne.s32.totalorder %s215, %s218
      %p224 = scmp.eq.s32.totalorder %s17, 0
      %p225 = por %p223, %p224
      %p226 = scmp.ne.s32.totalorder %s215, %s218
      %p227 = scmp.eq.s32.totalorder %s22, 3
      %p228 = por %p226, %p227
      %p229 = scmp.ne.s32.totalorder %s218, %s219
      %p230 = scmp.eq.s32.totalorder %s22, 0
      %p231 = por %p229, %p230
      %p232 = scmp.ne.s32.totalorder %s218, %s219
      %p233 = scmp.eq.s32.totalorder %s23, 3
      %p234 = por %p232, %p233
      %p236 = scmp.ne.s32.totalorder %s219, %s235
      %p237 = scmp.eq.s32.totalorder %s23, 0
      %p238 = por %p236, %p237
      %p239 = scmp.le.s32.totalorder 1, %s17
      %p240 = scmp.lt.s32.totalorder %s17, 5
      %p241 = pnand %p239, %p240
      %p242 = pneg %p241
      // Predicated region
      $region9: #{tpu_custom_call.1} parent=5 // pred_check
        _
      $region10: #{tpu_custom_call.1} parent=5 // pred_check_branch
        %244 = sbr.rel (%p241) target = $region12
      $region11: #{tpu_custom_call.1} parent=5 // pred_region
        %s245 = ssub.s32 %s17, 1
        // Predicated region
        $region13: #{tpu_custom_call.1} parent=11 // pred_check
          %p246 = pneg %p57
        $region14: #{tpu_custom_call.1} parent=11 // pred_check_branch
          %248 = sbr.rel (%p246) target = $region16
        $region15: #{tpu_custom_call.1} parent=11 // pred_region
          %250 = vsyncadd [#allocation5], 0
          %s252 = sshll.u32 %s0, 4
          %s253 = int_to_ptr.vmem [resolvable:$true] %s252
          %255 = dma.vmem_to_smem %s253, 16, [#allocation3], [#allocation5]
        $region16: #{tpu_custom_call.1} parent=11 // pred_fallthru
          _
        // Predicated region
        $region17: #{tpu_custom_call.1} parent=11 // pred_check
          %p256 = pneg %p78
        $region18: #{tpu_custom_call.1} parent=11 // pred_check_branch
          %258 = sbr.rel (%p256) target = $region20
        $region19: #{tpu_custom_call.1} parent=11 // pred_region
          _
        $region20: #{tpu_custom_call.1} parent=11 // pred_fallthru
          _
        // Predicated region
        $region21: #{tpu_custom_call.1} parent=11 // pred_check
          %p259 = pneg %p99
        $region22: #{tpu_custom_call.1} parent=11 // pred_check_branch
          %261 = sbr.rel (%p259) target = $region24
        $region23: #{tpu_custom_call.1} parent=11 // pred_region
          _
        $region24: #{tpu_custom_call.1} parent=11 // pred_fallthru
          _
        // Predicated region
        $region25: #{tpu_custom_call.1} parent=11 // pred_check
          %p262 = pneg %p120
        $region26: #{tpu_custom_call.1} parent=11 // pred_check_branch
          %264 = sbr.rel (%p262) target = $region28
        $region27: #{tpu_custom_call.1} parent=11 // pred_region
          _
        $region28: #{tpu_custom_call.1} parent=11 // pred_fallthru
          _
        // Predicated region
        $region29: #{tpu_custom_call.1} parent=11 // pred_check
          %p265 = pneg %p141
        $region30: #{tpu_custom_call.1} parent=11 // pred_check_branch
          %267 = sbr.rel (%p265) target = $region32
        $region31: #{tpu_custom_call.1} parent=11 // pred_region
          _
        $region32: #{tpu_custom_call.1} parent=11 // pred_fallthru
          _
      $region12: #{tpu_custom_call.1} parent=5 // pred_fallthru
        _
      %p268 = scmp.lt.s32.totalorder %s17, 4
      // Predicated region
      $region33: #{tpu_custom_call.1} parent=5 // pred_check
        %p269 = pneg %p268
      $region34: #{tpu_custom_call.1} parent=5 // pred_check_branch
        %271 = sbr.rel (%p269) target = $region36
      $region35: #{tpu_custom_call.1} parent=5 // pred_region
        // Predicated region
        $region37: #{tpu_custom_call.1} parent=35 // pred_check
          %p272 = pneg %p165
        $region38: #{tpu_custom_call.1} parent=35 // pred_check_branch
          %274 = sbr.rel (%p272) target = $region40
        $region39: #{tpu_custom_call.1} parent=35 // pred_region
          %s275 = sand.u32 %s155, 1
          %s276 = scalar_lea.sflag [#allocation4], %s275
          %s277 = sand.u32 %s155, 1
          %s278 = smul.addr %s277, 16
          %s279 = scalar_lea.vmem [#allocation6], %s278
          %s280 = sadd.s32 %s25, %s26
          %s281 = smul.u32 4, %s280
          %283 = vsyncadd %s276, 0
          %s284 = smul.addr %s24, 8
          %s285 = sadd.s32 %s281, %s284
          %s286 = smul.addr %s285, 4
          %s287 = scalar_lea.hbm %s5, %s286
          %s289 = sshll.u32 %s287, 4
          %s290 = int_to_ptr.hbm [resolvable:$true] %s289
          %s291 = sshll.u32 %s279, 4
          %s292 = int_to_ptr.vmem [resolvable:$true] %s291
          %294 = dma.hbm_to_vmem [thread:$0]  %s290, 256, %s292, %s276
        $region40: #{tpu_custom_call.1} parent=35 // pred_fallthru
          _
        // Predicated region
        $region41: #{tpu_custom_call.1} parent=35 // pred_check
          %p295 = pneg %p195
        $region42: #{tpu_custom_call.1} parent=35 // pred_check_branch
          %297 = sbr.rel (%p295) target = $region44
        $region43: #{tpu_custom_call.1} parent=35 // pred_region
          %s298 = sadd.s32 %s25, %s26
          %s299 = smul.u32 4, %s298
          %p300 = scmp.lt.s32.totalorder %s24, 1
          %s301 = scalar_select %p300, %s24, 1
          %p302 = scmp.lt.s32.totalorder %s299, 7
          %s303 = scalar_select %p302, %s299, 7
          %s304 = smul.addr %s301, 8
          %s305 = sadd.s32 %s303, %s304
          %s306 = smul.addr %s305, 2
          %s307 = scalar_lea.vmem %s6, %s306
          %s308 = sadd.s32 %s25, %s26
          %s309 = smul.u32 4, %s308
        $region44: #{tpu_custom_call.1} parent=35 // pred_fallthru
          _
      $region36: #{tpu_custom_call.1} parent=5 // pred_fallthru
        _
      %p310 = scmp.le.s32.totalorder 1, %s17
      %p311 = scmp.lt.s32.totalorder %s17, 5
      %p312 = pnand %p310, %p311
      %p313 = pneg %p312
      // Predicated region
      $region45: #{tpu_custom_call.1} parent=5 // pred_check
        _
      $region46: #{tpu_custom_call.1} parent=5 // pred_check_branch
        %315 = sbr.rel (%p312) target = $region48
      $region47: #{tpu_custom_call.1} parent=5 // pred_region
        %s316 = ssub.s32 %s17, 1
        // Predicated region
        $region49: #{tpu_custom_call.1} parent=47 // pred_check
          %p317 = pneg %p57
        $region50: #{tpu_custom_call.1} parent=47 // pred_check_branch
          %319 = sbr.rel (%p317) target = $region52
        $region51: #{tpu_custom_call.1} parent=47 // pred_region
          %321 = dma.done [#allocation5], 16
        $region52: #{tpu_custom_call.1} parent=47 // pred_fallthru
          _
        %s322 = sand.u32 %s158, 1
        %s323 = scalar_lea.sflag [#allocation4], %s322
        %s324 = sand.u32 %s158, 1
        %s325 = smul.addr %s324, 16
        %s326 = scalar_lea.vmem [#allocation6], %s325
        // Predicated region
        $region53: #{tpu_custom_call.1} parent=47 // pred_check
          %p327 = pneg %p171
        $region54: #{tpu_custom_call.1} parent=47 // pred_check_branch
          %329 = sbr.rel (%p327) target = $region56
        $region55: #{tpu_custom_call.1} parent=47 // pred_region
          %331 = dma.done %s323, 256
        $region56: #{tpu_custom_call.1} parent=47 // pred_fallthru
          _
        %332 = sfence
        %p333 = pneg %p57
        %p334 = pneg %p54
        %p335 = pneg %p78
        %p336 = pneg %p75
        %p337 = pneg %p99
        %p338 = pneg %p96
        %p339 = pneg %p120
        %p340 = pneg %p117
        %p341 = pneg %p141
        %p342 = pneg %p138
        %s343 = sand.u32 %s158, 1
        %s344 = scalar_lea.sflag [#allocation4], %s343
        %s345 = sand.u32 %s158, 1
        %s346 = smul.addr %s345, 16
        %s347 = scalar_lea.vmem [#allocation6], %s346
        %p348 = pneg %p171
        %p349 = pneg %p168
        %s350 = sadd.s32 %s28, %s29
        %s351 = smul.u32 4, %s350
        %p352 = scmp.lt.s32.totalorder %s27, 1
        %s353 = scalar_select %p352, %s27, 1
        %p354 = scmp.lt.s32.totalorder %s351, 7
        %s355 = scalar_select %p354, %s351, 7
        %s356 = smul.addr %s353, 8
        %s357 = sadd.s32 %s355, %s356
        %s358 = smul.addr %s357, 2
        %s359 = scalar_lea.vmem %s6, %s358
        %p360 = pneg %p201
        %p361 = pneg %p198
        %p362 = pneg %p231
        %p363 = pneg %p228
        %s364 = smul.u32 %s27, 2
        %s365 = sadd.s32 %s364, %s28
        %p366 = scmp.lt.s32.totalorder %s365, 3
        %s367 = scalar_select %p366, %s365, 3
        %s368 = scalar_lea.vmem %s7, %s367
        %s369 = sadd.s32 %s28, %s29
        %s370 = smul.u32 4, %s369
        %s371 = sadd.s32 %s28, %s29
        %s372 = smul.u32 4, %s371
        %p373 = scmp.lt.s32.totalorder %s27, 1
        %s374 = scalar_select %p373, %s27, 1
        %p375 = scmp.lt.s32.totalorder %s372, 7
        %s376 = scalar_select %p375, %s372, 7
        %s377 = smul.addr %s374, 8
        %s378 = sadd.s32 %s376, %s377
        %s379 = smul.addr %s378, 2
        %s380 = scalar_lea.vmem %s6, %s379
        %s381 = sadd.s32 %s28, %s29
        %s382 = smul.u32 4, %s381
        %s383 = smul.u32 %s27, 2
        %s384 = sadd.s32 %s383, %s28
        %p385 = scmp.lt.s32.totalorder %s384, 3
        %s386 = scalar_select %p385, %s384, 3
        %s387 = scalar_lea.vmem %s7, %s386
        %s388 = smul.u32 %s27, 2
        %s389 = sadd.s32 %s388, %s28
        %p390 = scmp.eq.s32.totalorder %s29, 0
        // Predicated region
        $region57: #{tpu_custom_call.1} parent=47 // pred_check
          %p391 = pneg %p390
        $region58: #{tpu_custom_call.1} parent=47 // pred_check_branch
          %393 = sbr.rel (%p391) target = $region60
        $region59: #{tpu_custom_call.1} parent=47 // pred_region
          %394 = vst [vmem:[#allocation2] sm:$0xff] 0.0
          %395 = vst [vmem:[#allocation2 + $0x8] sm:$0xff] 0.0
        $region60: #{tpu_custom_call.1} parent=47 // pred_fallthru
          _
        %v396 = vld [vmem:[%s326] sm:$0xff]
        %v397 = vld [vmem:[%s326 + $0x8] sm:$0xff]
        %v398 = vld [vmem:[%s380] sm:$0xff]
        %v399 = vld [vmem:[%s1] sm:$0xff]
        %v400 = vld [vmem:[%s1 + $0x8] sm:$0xff]
        %v401 = vld [vmem:[%s1 + $0x10] sm:$0xff]
        %v402 = vld [vmem:[%s2] sm:$0xff]
        %v403 = vld [vmem:[%s2 + $0x8] sm:$0xff]
        %v404 = vld [vmem:[%s2 + $0x10] sm:$0xff]
        %406 = vset.pattern.permute.xlu0 0
        %407 = vperm.xlu0 %406, %v402
        %v408 = vpop.permute.xlu0 %407
        %411 = vset.pattern.permute.xlu0 0
        %412 = vperm.xlu0 %411, %v403
        %v413 = vpop.permute.xlu0 %412
        %416 = vset.pattern.permute.xlu0 0
        %417 = vperm.xlu0 %416, %v404
        %v418 = vpop.permute.xlu0 %417
        %422 = vst [vmem:[#allocation1] ss:$2 sm:$0xff] %v396
        %s423 = scalar_lea.vmem [#allocation1], 16
        %424 = vst [vmem:[%s423] ss:$2 sm:$0xff] %v397
        %v425 = vld.sshfl [vmem:[#allocation1] sm:$0xff pattern:$0x75316420]
        %v426 = vld.sshfl [vmem:[#allocation1 + $0x8] sm:$0xff pattern:$0x75316420]
        %v427 = vld.sshfl [vmem:[#allocation1 + $0x10] sm:$0xff pattern:$0x75316420]
        %v428 = vld.sshfl [vmem:[#allocation1 + $0x18] sm:$0xff pattern:$0x75316420]
        %vm429 = vcmask 31744
        %v431 = vsel %vm429, %v399, 0
        %v434 = vsel %vm429, %v400, 0
        %v437 = vsel %vm429, %v401, 0
        %vm439 = vcmask 1043456
        %v440 = vsel %vm439, %v425, 0
        %v442 = vsel %vm439, %v426, 0
        %v444 = vsel %vm439, %v427, 0
        %v446 = vsel %vm439, %v428, 0
        %448 = vmatpush.msra.mxu0 0.0
        %449 = vmatpush.msra.mxu0 0.0
        %450 = vmatpush.msra.mxu0 0.0
        %451 = vmatpush.msra.mxu0 0.0
        %452 = vmatpush.msra.mxu0 0.0
        %453 = vmatpush.msra.mxu0 0.0
        %454 = vmatpush.msra.mxu0 0.0
        %455 = vmatpush.msra.mxu0 0.0
        %456 = vmatpush.msra.mxu0 0.0
        %457 = vmatpush.msra.mxu0 0.0
        %458 = vmatpush.msra.mxu0 0.0
        %459 = vmatpush.msra.mxu0 0.0
        %460 = vmatpush.msra.mxu0 0.0
        %461 = vmatpush.msra.mxu0 0.0
        %462 = vmatpush.msra.mxu0 0.0
        %463 = vmatpush.msra.mxu0 %v440
        %464 = vmatmul.f32.gmra.mxu0 %v431
        %v465 = vpop.f32.mrf.mxu0
        %v466 = vadd.f32 %v408, %v465
        %467 = vmatmul.f32.gmra.mxu0 %v434
        %v468 = vpop.f32.mrf.mxu0
        %v469 = vadd.f32 %v413, %v468
        %470 = vmatmul.f32.gmra.mxu0 %v437
        %v471 = vpop.f32.mrf.mxu0
        %v472 = vadd.f32 %v418, %v471
        %473 = vdwg.mxu0
        %474 = vmatpush.msra.mxu0 0.0
        %475 = vmatpush.msra.mxu0 0.0
        %476 = vmatpush.msra.mxu0 0.0
        %477 = vmatpush.msra.mxu0 0.0
        %478 = vmatpush.msra.mxu0 0.0
        %479 = vmatpush.msra.mxu0 0.0
        %480 = vmatpush.msra.mxu0 0.0
        %481 = vmatpush.msra.mxu0 0.0
        %482 = vmatpush.msra.mxu0 0.0
        %483 = vmatpush.msra.mxu0 0.0
        %484 = vmatpush.msra.mxu0 0.0
        %485 = vmatpush.msra.mxu0 0.0
        %486 = vmatpush.msra.mxu0 0.0
        %487 = vmatpush.msra.mxu0 0.0
        %488 = vmatpush.msra.mxu0 0.0
        %489 = vmatpush.msra.mxu0 %v442
        %490 = vmatmul.f32.gmra.mxu0 %v431
        %v491 = vpop.f32.mrf.mxu0
        %v492 = vadd.f32 %v408, %v491
        %493 = vmatmul.f32.gmra.mxu0 %v434
        %v494 = vpop.f32.mrf.mxu0
        %v495 = vadd.f32 %v413, %v494
        %496 = vmatmul.f32.gmra.mxu0 %v437
        %v497 = vpop.f32.mrf.mxu0
        %v498 = vadd.f32 %v418, %v497
        %499 = vdwg.mxu0
        %500 = vmatpush.msra.mxu0 0.0
        %501 = vmatpush.msra.mxu0 0.0
        %502 = vmatpush.msra.mxu0 0.0
        %503 = vmatpush.msra.mxu0 0.0
        %504 = vmatpush.msra.mxu0 0.0
        %505 = vmatpush.msra.mxu0 0.0
        %506 = vmatpush.msra.mxu0 0.0
        %507 = vmatpush.msra.mxu0 0.0
        %508 = vmatpush.msra.mxu0 0.0
        %509 = vmatpush.msra.mxu0 0.0
        %510 = vmatpush.msra.mxu0 0.0
        %511 = vmatpush.msra.mxu0 0.0
        %512 = vmatpush.msra.mxu0 0.0
        %513 = vmatpush.msra.mxu0 0.0
        %514 = vmatpush.msra.mxu0 0.0
        %515 = vmatpush.msra.mxu0 %v444
        %516 = vmatmul.f32.gmra.mxu0 %v431
        %v517 = vpop.f32.mrf.mxu0
        %v518 = vadd.f32 %v408, %v517
        %519 = vmatmul.f32.gmra.mxu0 %v434
        %v520 = vpop.f32.mrf.mxu0
        %v521 = vadd.f32 %v413, %v520
        %522 = vmatmul.f32.gmra.mxu0 %v437
        %v523 = vpop.f32.mrf.mxu0
        %v524 = vadd.f32 %v418, %v523
        %525 = vdwg.mxu0
        %526 = vmatpush.msra.mxu0 0.0
        %527 = vmatpush.msra.mxu0 0.0
        %528 = vmatpush.msra.mxu0 0.0
        %529 = vmatpush.msra.mxu0 0.0
        %530 = vmatpush.msra.mxu0 0.0
        %531 = vmatpush.msra.mxu0 0.0
        %532 = vmatpush.msra.mxu0 0.0
        %533 = vmatpush.msra.mxu0 0.0
        %534 = vmatpush.msra.mxu0 0.0
        %535 = vmatpush.msra.mxu0 0.0
        %536 = vmatpush.msra.mxu0 0.0
        %537 = vmatpush.msra.mxu0 0.0
        %538 = vmatpush.msra.mxu0 0.0
        %539 = vmatpush.msra.mxu0 0.0
        %540 = vmatpush.msra.mxu0 0.0
        %541 = vmatpush.msra.mxu0 %v446
        %542 = vmatmul.f32.gmra.mxu0 %v431
        %v543 = vpop.f32.mrf.mxu0
        %v544 = vadd.f32 %v408, %v543
        %545 = vmatmul.f32.gmra.mxu0 %v434
        %v546 = vpop.f32.mrf.mxu0
        %v547 = vadd.f32 %v413, %v546
        %548 = vmatmul.f32.gmra.mxu0 %v437
        %v549 = vpop.f32.mrf.mxu0
        %v550 = vadd.f32 %v418, %v549
        %551 = vdwg.mxu0
        %v552 = vmax.f32 %v466, 0.0
        %v553 = vmax.f32 %v492, 0.0
        %v554 = vmax.f32 %v518, 0.0
        %v555 = vmax.f32 %v544, 0.0
        %v556 = vmax.f32 %v469, 0.0
        %v557 = vmax.f32 %v495, 0.0
        %v558 = vmax.f32 %v521, 0.0
        %v559 = vmax.f32 %v547, 0.0
        %v560 = vmax.f32 %v472, 0.0
        %v561 = vmax.f32 %v498, 0.0
        %v562 = vmax.f32 %v524, 0.0
        %v563 = vmax.f32 %v550, 0.0
        %v564 = vld [vmem:[%s3] sm:$0xff]
        %v565 = vld [vmem:[%s3 + $0x8] sm:$0xf]
        %v566 = vld [vmem:[%s4] sm:$0xff]
        %v567 = vld [vmem:[%s4 + $0x8] sm:$0xf]
        %569 = vset.pattern.permute.xlu0 0
        %570 = vperm.xlu0 %569, %v566
        %v571 = vpop.permute.xlu0 %570
        %574 = vset.pattern.permute.xlu0 0
        %575 = vperm.xlu0 %574, %v567
        %v576 = vpop.permute.xlu0 %575
        %vm578 = vcmask 195584
        %v580 = vsel %vm578, %v564, 0
        %v583 = vsel %vm578, %v565, 0
        %585 = vmatpush.msra.mxu0 0.0
        %586 = vmatpush.msra.mxu0 0.0
        %587 = vmatpush.msra.mxu0 0.0
        %588 = vmatpush.msra.mxu0 0.0
        %589 = vmatpush.msra.mxu0 0.0
        %590 = vmatpush.msra.mxu0 0.0
        %591 = vmatpush.msra.mxu0 0.0
        %592 = vmatpush.msra.mxu0 0.0
        %593 = vmatpush.msra.mxu0 0.0
        %594 = vmatpush.msra.mxu0 0.0
        %595 = vmatpush.msra.mxu0 0.0
        %596 = vmatpush.msra.mxu0 0.0
        %597 = vmatpush.msra.mxu0 0.0
        %598 = vmatpush.msra.mxu0 %v560
        %599 = vmatpush.msra.mxu0 %v556
        %600 = vmatpush.msra.mxu0 %v552
        %601 = vmatmul.f32.gmra.mxu0 %v580
        %v602 = vpop.f32.mrf.mxu0
        %v603 = vadd.f32 %v571, %v602
        %604 = vmatmul.f32.gmra.mxu0 %v583
        %v605 = vpop.f32.mrf.mxu0
        %v606 = vadd.f32 %v576, %v605
        %607 = vdwg.mxu0
        %608 = vmatpush.msra.mxu0 0.0
        %609 = vmatpush.msra.mxu0 0.0
        %610 = vmatpush.msra.mxu0 0.0
        %611 = vmatpush.msra.mxu0 0.0
        %612 = vmatpush.msra.mxu0 0.0
        %613 = vmatpush.msra.mxu0 0.0
        %614 = vmatpush.msra.mxu0 0.0
        %615 = vmatpush.msra.mxu0 0.0
        %616 = vmatpush.msra.mxu0 0.0
        %617 = vmatpush.msra.mxu0 0.0
        %618 = vmatpush.msra.mxu0 0.0
        %619 = vmatpush.msra.mxu0 0.0
        %620 = vmatpush.msra.mxu0 0.0
        %621 = vmatpush.msra.mxu0 %v561
        %622 = vmatpush.msra.mxu0 %v557
        %623 = vmatpush.msra.mxu0 %v553
        %624 = vmatmul.f32.gmra.mxu0 %v580
        %v625 = vpop.f32.mrf.mxu0
        %v626 = vadd.f32 %v571, %v625
        %627 = vmatmul.f32.gmra.mxu0 %v583
        %v628 = vpop.f32.mrf.mxu0
        %v629 = vadd.f32 %v576, %v628
        %630 = vdwg.mxu0
        %631 = vmatpush.msra.mxu0 0.0
        %632 = vmatpush.msra.mxu0 0.0
        %633 = vmatpush.msra.mxu0 0.0
        %634 = vmatpush.msra.mxu0 0.0
        %635 = vmatpush.msra.mxu0 0.0
        %636 = vmatpush.msra.mxu0 0.0
        %637 = vmatpush.msra.mxu0 0.0
        %638 = vmatpush.msra.mxu0 0.0
        %639 = vmatpush.msra.mxu0 0.0
        %640 = vmatpush.msra.mxu0 0.0
        %641 = vmatpush.msra.mxu0 0.0
        %642 = vmatpush.msra.mxu0 0.0
        %643 = vmatpush.msra.mxu0 0.0
        %644 = vmatpush.msra.mxu0 %v562
        %645 = vmatpush.msra.mxu0 %v558
        %646 = vmatpush.msra.mxu0 %v554
        %647 = vmatmul.f32.gmra.mxu0 %v580
        %v648 = vpop.f32.mrf.mxu0
        %v649 = vadd.f32 %v571, %v648
        %650 = vmatmul.f32.gmra.mxu0 %v583
        %v651 = vpop.f32.mrf.mxu0
        %v652 = vadd.f32 %v576, %v651
        %653 = vdwg.mxu0
        %654 = vmatpush.msra.mxu0 0.0
        %655 = vmatpush.msra.mxu0 0.0
        %656 = vmatpush.msra.mxu0 0.0
        %657 = vmatpush.msra.mxu0 0.0
        %658 = vmatpush.msra.mxu0 0.0
        %659 = vmatpush.msra.mxu0 0.0
        %660 = vmatpush.msra.mxu0 0.0
        %661 = vmatpush.msra.mxu0 0.0
        %662 = vmatpush.msra.mxu0 0.0
        %663 = vmatpush.msra.mxu0 0.0
        %664 = vmatpush.msra.mxu0 0.0
        %665 = vmatpush.msra.mxu0 0.0
        %666 = vmatpush.msra.mxu0 0.0
        %667 = vmatpush.msra.mxu0 %v563
        %668 = vmatpush.msra.mxu0 %v559
        %669 = vmatpush.msra.mxu0 %v555
        %670 = vmatmul.f32.gmra.mxu0 %v580
        %v671 = vpop.f32.mrf.mxu0
        %v672 = vadd.f32 %v571, %v671
        %673 = vmatmul.f32.gmra.mxu0 %v583
        %v674 = vpop.f32.mrf.mxu0
        %v675 = vadd.f32 %v576, %v674
        %676 = vdwg.mxu0
        %s677 = sld [smem:[#allocation3]]
        %v678 = vstv %s677
        %v679 = vmul.f32 %v398, %v678
        %s680 = sld [smem:[#allocation3 + $0x1]]
        %v681 = vstv %s680
        %v682 = vmul.f32 %v398, %v681
        %v684 = vrot.slane %v682, 7
        %v685 = vrot.slane %v684, 2
        %v687 = vadd.f32 %v679, %v685
        %s688 = sld [smem:[#allocation3 + $0x6]]
        %v689 = vstv %s688
        %v690 = vadd.f32 %v687, %v689
        %s691 = sld [smem:[#allocation3 + $0x2]]
        %v692 = vstv %s691
        %v693 = vmul.f32 %v398, %v692
        %s694 = sld [smem:[#allocation3 + $0x3]]
        %v695 = vstv %s694
        %v696 = vmul.f32 %v398, %v695
        %v698 = vrot.slane %v696, 7
        %v699 = vrot.slane %v698, 2
        %v701 = vadd.f32 %v693, %v699
        %s702 = sld [smem:[#allocation3 + $0x7]]
        %v703 = vstv %s702
        %v704 = vadd.f32 %v701, %v703
        %s705 = sld [smem:[#allocation3 + $0x4]]
        %v706 = vstv %s705
        %v707 = vmul.f32 %v398, %v706
        %s708 = sld [smem:[#allocation3 + $0x5]]
        %v709 = vstv %s708
        %v710 = vmul.f32 %v398, %v709
        %v712 = vrot.slane %v710, 7
        %v713 = vrot.slane %v712, 2
        %v715 = vadd.f32 %v707, %v713
        %s716 = sld [smem:[#allocation3 + $0x8]]
        %v717 = vstv %s716
        %v718 = vadd.f32 %v715, %v717
        %v719 = vmax.f32 %v690, %v704
        %v720 = vmax.f32 %v719, %v718
        %v721 = vsub.f32 %v690, %v720
        %v722 = vmul.f32 %v721, 1.442695
        %v723 = vpow.pop %v722
        %v724 = vsub.f32 %v704, %v720
        %v725 = vmul.f32 %v724, 1.442695
        %v726 = vpow.pop %v725
        %v727 = vsub.f32 %v718, %v720
        %v728 = vmul.f32 %v727, 1.442695
        %v729 = vpow.pop %v728
        %v730 = vadd.f32 %v723, %v726
        %v731 = vadd.f32 %v730, %v729
        %v732 = vrcp.pop %v731
        %v733 = vmul.f32 %v731, %v732
        %v734 = vsub.f32 1.0, %v733
        %v735 = vmul.f32 %v732, %v734
        %v736 = vadd.f32 %v732, %v735
        %vm737 = vweird.f32 %v731
        %vm738 = vweird.f32 %v732
        %vm739 = vmor %vm737, %vm738
        %v740 = vsel %vm739, %v732, %v736
        %v741 = vand.u32 2147483647, %v731
        %vm742 = vcmp.eq.f32.partialorder %v741, 8.507059e+37
        %v743 = vand.u32 %v731, 2147483648
        %v744 = vor.u32 1.1754944e-38, %v743
        %v745 = vsel %vm742, %v744, %v740
        %v746 = vmul.f32 %v723, %v745
        %v747 = vmul.f32 %v726, %v745
        %v748 = vmul.f32 %v729, %v745
        %v750 = vperm.slane %v746, 0
        %v751 = vperm.slane %v746, 2
        %v752 = vperm.slane %v746, 4
        %v753 = vperm.slane %v746, 6
        %v758 = vperm.slane %v750, 0
        %v759 = vperm.slane %v751, 0
        %v760 = vperm.slane %v752, 0
        %v761 = vperm.slane %v753, 0
        %v762 = vmul.f32 %v758, %v603
        %v763 = vmul.f32 %v759, %v626
        %v764 = vmul.f32 %v760, %v649
        %v765 = vmul.f32 %v761, %v672
        %v767 = vperm.slane %v747, 0
        %v768 = vperm.slane %v747, 2
        %v769 = vperm.slane %v747, 4
        %v770 = vperm.slane %v747, 6
        %v775 = vperm.slane %v767, 0
        %v776 = vperm.slane %v768, 0
        %v777 = vperm.slane %v769, 0
        %v778 = vperm.slane %v770, 0
        %v779 = vmul.f32 %v775, %v603
        %v780 = vmul.f32 %v776, %v626
        %v781 = vmul.f32 %v777, %v649
        %v782 = vmul.f32 %v778, %v672
        %v787 = vrot.slane %v779, 4
        %v788 = vrot.slane %v780, 4
        %v789 = vrot.slane %v781, 4
        %v790 = vrot.slane %v782, 4
        %v795 = vadd.f32 %v762, %v787
        %v796 = vadd.f32 %v763, %v788
        %v797 = vadd.f32 %v764, %v789
        %v798 = vadd.f32 %v765, %v790
        %v800 = vperm.slane %v748, 0
        %v801 = vperm.slane %v748, 2
        %v802 = vperm.slane %v748, 4
        %v803 = vperm.slane %v748, 6
        %v808 = vperm.slane %v800, 0
        %v809 = vperm.slane %v801, 0
        %v810 = vperm.slane %v802, 0
        %v811 = vperm.slane %v803, 0
        %v812 = vmul.f32 %v808, %v606
        %v813 = vmul.f32 %v809, %v629
        %v814 = vmul.f32 %v810, %v652
        %v815 = vmul.f32 %v811, %v675
        %v816 = vadd.f32 %v795, %v812
        %v817 = vadd.f32 %v796, %v813
        %v818 = vadd.f32 %v797, %v814
        %v819 = vadd.f32 %v798, %v815
        %v824 = vrot.slane %v817, 4
        %v825 = vrot.slane %v819, 4
        %v826 = vsel %vm439, %v816, %v824
        %v827 = vsel %vm439, %v818, %v825
        %v830 = vsub.f32 %v396, %v826
        %v831 = vsub.f32 %v397, %v827
        %v832 = vld [vmem:[#allocation2] sm:$0xff]
        %v833 = vld [vmem:[#allocation2 + $0x8] sm:$0xff]
        %v834 = vmul.f32 %v830, %v830
        %v835 = vmul.f32 %v831, %v831
        %v836 = vadd.f32 %v832, %v834
        %v837 = vadd.f32 %v833, %v835
        %838 = vst [vmem:[#allocation2] sm:$0xff] %v836
        %839 = vst [vmem:[#allocation2 + $0x8] sm:$0xff] %v837
        // Predicated region
        $region61: #{tpu_custom_call.1} parent=47 // pred_check
          %p840 = pneg %p390
        $region62: #{tpu_custom_call.1} parent=47 // pred_check_branch
          %842 = sbr.rel (%p840) target = $region64
        $region63: #{tpu_custom_call.1} parent=47 // pred_region
          %v843 = vld [vmem:[#allocation2] sm:$0xff]
          %v844 = vld [vmem:[#allocation2 + $0x8] sm:$0xff]
          %847 = vst [vmem:[#allocation1] ss:$2 sm:$0xff] %v843
          %s848 = scalar_lea.vmem [#allocation1], 16
          %849 = vst [vmem:[%s848] ss:$2 sm:$0xff] %v844
          %v850 = vld.sshfl [vmem:[#allocation1] sm:$0xff pattern:$0x75316420]
          %v851 = vld.sshfl [vmem:[#allocation1 + $0x8] sm:$0xff pattern:$0x75316420]
          %v852 = vld.sshfl [vmem:[#allocation1 + $0x10] sm:$0xff pattern:$0x75316420]
          %v853 = vld.sshfl [vmem:[#allocation1 + $0x18] sm:$0xff pattern:$0x75316420]
          %v858 = vsel %vm439, %v850, 0.0
          %v859 = vsel %vm439, %v851, 0.0
          %v860 = vadd.f32 %v858, %v859
          %v861 = vsel %vm439, %v852, 0.0
          %v862 = vadd.f32 %v860, %v861
          %v863 = vsel %vm439, %v853, 0.0
          %v864 = vadd.f32 %v862, %v863
          %865 = vadd.xlane.f32.xlu0 %v864
          %v866 = vpop.xlane.xlu0 %865
          %v867 = vrot.slane %v866, 4
          %v868 = vadd.f32 %v866, %v867
          %v869 = vrot.slane %v868, 2
          %v870 = vadd.f32 %v868, %v869
          %v871 = vrot.slane %v870, 1
          %v872 = vadd.f32 %v870, %v871
          %s873 = vtos %v872
          %v874 = vstv %s873
          %vm875 = vcmask 0
          %876 = vst.msk [vmem:[%s387] sm:$0x1] %vm875, %v874
        $region64: #{tpu_custom_call.1} parent=47 // pred_fallthru
          _
        %s877 = smul.u32 %s27, 2
        %s878 = sadd.s32 %s877, %s28
        %p879 = scmp.lt.s32.totalorder %s878, 3
        %s880 = scalar_select %p879, %s878, 3
        %s881 = scalar_lea.vmem %s7, %s880
        // Predicated region
        $region65: #{tpu_custom_call.1} parent=47 // pred_check
          %p882 = pneg %p228
        $region66: #{tpu_custom_call.1} parent=47 // pred_check_branch
          %884 = sbr.rel (%p882) target = $region68
        $region67: #{tpu_custom_call.1} parent=47 // pred_region
          %s885 = smul.u32 %s27, 2
          %s886 = sadd.s32 %s885, %s28
        $region68: #{tpu_custom_call.1} parent=47 // pred_fallthru
          _
      $region48: #{tpu_custom_call.1} parent=5 // pred_fallthru
        _
      %p887 = scmp.le.s32.totalorder 2, %s17
      // Predicated region
      $region69: #{tpu_custom_call.1} parent=5 // pred_check
        %p888 = pneg %p887
      $region70: #{tpu_custom_call.1} parent=5 // pred_check_branch
        %890 = sbr.rel (%p888) target = $region72
      $region71: #{tpu_custom_call.1} parent=5 // pred_region
        %s891 = ssub.s32 %s17, 2
        // Predicated region
        $region73: #{tpu_custom_call.1} parent=71 // pred_check
          %p892 = pneg %p234
        $region74: #{tpu_custom_call.1} parent=71 // pred_check_branch
          %894 = sbr.rel (%p892) target = $region76
        $region75: #{tpu_custom_call.1} parent=71 // pred_region
          %s895 = smul.u32 %s30, 2
          %s896 = sadd.s32 %s895, %s31
          %p897 = scmp.lt.s32.totalorder %s896, 3
          %s898 = scalar_select %p897, %s896, 3
          %s899 = scalar_lea.vmem %s7, %s898
        $region76: #{tpu_custom_call.1} parent=71 // pred_fallthru
          _
      $region72: #{tpu_custom_call.1} parent=5 // pred_fallthru
        _
    $region6: #{tpu_custom_call.1} parent=1 // loop_footer
      %s21 = sadd.s32 1, %s17
    $region7: #{tpu_custom_call.1} parent=1 // loop_footer_branch
      %16 = sbr.rel target = $region3
    $region8: #{tpu_custom_call.1} parent=1 // loop_exit
      _
    %900 = vsyncpa [#allocation4], 1
    %s901 = scalar_lea.sflag [#allocation4], 1
    %902 = vsyncpa %s901, 1
    %903 = vsyncpa [#allocation5], 1
    %s904 = scalar_lea.sflag [#allocation5], 1
    %905 = vsyncpa %s904, 1

</llo_original>
